<compile_context>
chip_gen: v5e
topology: v5e:2x2
jax: 0.10.0
libtpu: 0.0.40
codegen_flags: <defaults>
</compile_context>

<pallas_src>
import jax
import jax.numpy as jnp
from jax.experimental import pallas as pl
from jax.experimental.pallas import tpu as pltpu


def make_positional_encoding(d_model, max_len=5000, dtype=jnp.float32):
    """pe buffer, identical math to the PyTorch __init__; shape (max_len, d_model)."""
    position = jnp.arange(0, max_len, dtype=jnp.float32)[:, None]            # (max_len, 1)
    div_term = jnp.exp(
        jnp.arange(0, d_model, 2, dtype=jnp.float32)
        * (-jnp.log(jnp.float32(10000.0)) / d_model)
    )                                                                         # (d_model//2,)
    angles = position * div_term                                              # (max_len, d_model//2)
    pe = jnp.zeros((max_len, d_model), dtype=jnp.float32)
    pe = pe.at[:, 0::2].set(jnp.sin(angles))
    pe = pe.at[:, 1::2].set(jnp.cos(angles))
    return pe.astype(dtype)


def _pe_add_2d_kernel(x_ref, pe_ref, o_ref):
    # Dense 2D add: (block_seq, B*D) tiles; seq on sublanes, B*D on lanes.
    o_ref[...] = x_ref[...] + pe_ref[...]


def _pe_add_bcast_kernel(x_ref, pe_ref, o_ref):
    # x: (block_seq, B, D); pe: (block_seq, D) broadcast over the batch axis.
    o_ref[...] = x_ref[...] + pe_ref[...][:, None, :]


def _padded_bytes(shape, itemsize):
    """VMEM bytes of one buffer after (sublane, lane) tiling/padding."""
    sub = 8 * max(1, 4 // itemsize)          # 8 rows f32, 16 bf16, 32 int8
    dims = list(shape)
    dims[-1] = pl.cdiv(dims[-1], 128) * 128
    if len(dims) >= 2:
        dims[-2] = pl.cdiv(dims[-2], sub) * sub
    n = itemsize
    for d in dims:
        n *= d
    return int(n)


def _pick_block_seq(S, padded_row_bytes, target_bytes=4 << 20):
    """~4 MiB (padded) x-tiles, multiple of 8 sublanes, capped at the padded
    sequence length.  No forced multi-step split (single-TC v5e/v6e)."""
    bs = max(8, (target_bytes // max(1, padded_row_bytes)) // 8 * 8)
    bs = min(bs, pl.cdiv(S, 8) * 8)
    return int(bs)


def positional_encoding_forward(x, pe, *, block_seq=None, donate_x=False):
    """x: (S, B, D); pe: (max_len, D). Returns x + pe[:S] (dropout = identity, eval mode)."""
    S, B, D = x.shape
    max_len, d_model = pe.shape
    assert d_model == D, f"pe d_model {d_model} != x d_model {D}"
    assert S <= max_len, f"seq_len {S} exceeds max_len {max_len}"
    if pe.dtype != x.dtype:
        # One-time cast (build pe in x.dtype to avoid it).  PyTorch keeps pe
        # fp32 and upcasts the add; for bf16 x this introduces tiny drift.
        pe = pe.astype(x.dtype)

    itemsize = x.dtype.itemsize
    alias = {"input_output_aliases": {0: 0}} if donate_x else {}

    if B < 8:
        # ---- lane-dense 2D path (small batch) -------------------------------
        cols = B * D
        x2 = x.reshape(S, cols)                     # free for row-major (S, B, D)
        pe2 = jnp.tile(pe, (1, B))                  # pe2[s, b*D + d] == pe[s, d]

        padded_row_bytes = (pl.cdiv(cols, 128) * 128) * itemsize
        if block_seq is None:
            block_seq = _pick_block_seq(S, padded_row_bytes)
        assert block_seq % 8 == 0, "block_seq must be a multiple of 8"
        num_blocks = pl.cdiv(S, block_seq)

        tile_bytes = _padded_bytes((block_seq, cols), itemsize)
        working_set = 2 * 3 * tile_bytes            # x + pe + out, double-buffered
        vmem_limit = max(int(working_set * 1.25) + (1 << 20), 32 << 20)

        out2 = pl.pallas_call(
            _pe_add_2d_kernel,
            out_shape=jax.ShapeDtypeStruct((S, cols), x.dtype),
            grid_spec=pltpu.PrefetchScalarGridSpec(
                num_scalar_prefetch=0,
                grid=(num_blocks,),
                in_specs=[
                    pl.BlockSpec((block_seq, cols), lambda i: (i, 0)),
                    pl.BlockSpec((block_seq, cols), lambda i: (i, 0)),
                ],
                out_specs=pl.BlockSpec((block_seq, cols), lambda i: (i, 0)),
            ),
            compiler_params=pltpu.CompilerParams(
                dimension_semantics=("parallel",),
                vmem_limit_bytes=vmem_limit,
            ),
            **alias,
        )(x2, pe2)
        return out2.reshape(S, B, D)

    # ---- 3D path (B >= 8): dense sublanes, pe read once per seq row ---------
    sub = 8 * max(1, 4 // itemsize)
    padded_row_bytes = (pl.cdiv(B, sub) * sub) * (pl.cdiv(D, 128) * 128) * itemsize
    if block_seq is None:
        block_seq = _pick_block_seq(S, padded_row_bytes)
    assert block_seq % 8 == 0, "block_seq must be a multiple of 8"
    num_blocks = pl.cdiv(S, block_seq)

    x_tile = _padded_bytes((block_seq, B, D), itemsize)
    pe_tile = _padded_bytes((block_seq, D), itemsize)
    working_set = 2 * (2 * x_tile + pe_tile)        # x + out + pe, double-buffered
    vmem_limit = max(int(working_set * 1.25) + (1 << 20), 32 << 20)

    out = pl.pallas_call(
        _pe_add_bcast_kernel,
        out_shape=jax.ShapeDtypeStruct((S, B, D), x.dtype),
        grid_spec=pltpu.PrefetchScalarGridSpec(
            num_scalar_prefetch=0,
            grid=(num_blocks,),
            in_specs=[
                pl.BlockSpec((block_seq, B, D), lambda i: (i, 0, 0)),
                pl.BlockSpec((block_seq, D), lambda i: (i, 0)),
            ],
            out_specs=pl.BlockSpec((block_seq, B, D), lambda i: (i, 0, 0)),
        ),
        compiler_params=pltpu.CompilerParams(
            dimension_semantics=("parallel",),
            vmem_limit_bytes=vmem_limit,
        ),
        **alias,
    )(x, pe)
    return out


if __name__ == "__main__":
    key = jax.random.PRNGKey(0)
    max_len = 64

    pe32 = make_positional_encoding(32, max_len=max_len, dtype=jnp.float32)
    pe64 = make_positional_encoding(64, max_len=max_len, dtype=jnp.float32)

    def ref(x, pe):
        return x + pe[: x.shape[0]][:, None, :]

    # 1) Small-batch path (B < 8 -> lane-dense 2D reshape), single grid step.
    x1 = jax.random.normal(key, (8, 2, 32), dtype=jnp.float32)
    y1 = jax.block_until_ready(positional_encoding_forward(x1, pe32))
    assert y1.shape == (8, 2, 32)
    assert jnp.allclose(y1, ref(x1, pe32), atol=1e-6, rtol=1e-6)

    # 2) Ragged sequence (S=20, block_seq=8 -> 3 grid steps, masked tail block).
    x2 = jax.random.normal(jax.random.PRNGKey(1), (20, 2, 32), dtype=jnp.float32)
    y2 = jax.block_until_ready(positional_encoding_forward(x2, pe32, block_seq=8))
    assert jnp.allclose(y2, ref(x2, pe32), atol=1e-6, rtol=1e-6)

    # 3) Fully lane-dense case: B*D == 128.
    x3 = jax.random.normal(jax.random.PRNGKey(2), (16, 2, 64), dtype=jnp.float32)
    y3 = jax.block_until_ready(positional_encoding_forward(x3, pe64))
    assert jnp.allclose(y3, ref(x3, pe64), atol=1e-6, rtol=1e-6)

    # 4) Large-batch path (B >= 8 -> 3D block + in-kernel pe broadcast).
    x4 = jax.random.normal(jax.random.PRNGKey(3), (16, 8, 32), dtype=jnp.float32)
    y4 = jax.block_until_ready(positional_encoding_forward(x4, pe32))
    assert jnp.allclose(y4, ref(x4, pe32), atol=1e-6, rtol=1e-6)

    print("KERNEL_OK")
</pallas_src>

<mosaic_0001>
module attributes {stable_mosaic.version = 11 : i64} {
  func.func @_pe_add_2d_kernel(%arg0: i32, %arg1: memref<8x64xf32, #tpu.memory_space<vmem>>, %arg2: memref<8x64xf32, #tpu.memory_space<vmem>>, %arg3: memref<8x64xf32, #tpu.memory_space<vmem>>) attributes {dimension_semantics = [#tpu.dimension_semantics<parallel>], iteration_bounds = array<i64: 1>, scalar_prefetch = 0 : i64, scratch_operands = 0 : i64, tpu.core_type = #tpu.core_type<tc>, window_params = [{transform_indices = @transform_0, window_bounds = array<i64: 8, 64>}, {transform_indices = @transform_1, window_bounds = array<i64: 8, 64>}, {transform_indices = @transform_2, window_bounds = array<i64: 8, 64>}]} {
    %c0 = arith.constant 0 : index
    %c0_0 = arith.constant 0 : index
    %0 = vector.load %arg1[%c0, %c0_0] : memref<8x64xf32, #tpu.memory_space<vmem>>, vector<8x64xf32>
    %c0_1 = arith.constant 0 : index
    %c0_2 = arith.constant 0 : index
    %1 = vector.load %arg2[%c0_1, %c0_2] : memref<8x64xf32, #tpu.memory_space<vmem>>, vector<8x64xf32>
    %2 = arith.addf %0, %1 : vector<8x64xf32>
    %c0_3 = arith.constant 0 : index
    %c0_4 = arith.constant 0 : index
    %3 = vector.load %arg3[%c0_3, %c0_4] : memref<8x64xf32, #tpu.memory_space<vmem>>, vector<8x64xf32>
    tpu.vector_store %arg3[%c0_3, %c0_4], %2 {strides = array<i32>} : memref<8x64xf32, #tpu.memory_space<vmem>>, vector<8x64xf32>,
    return
  }
  func.func @transform_0(%arg0: i32) -> (i32, i32) {
    %c0_i32 = arith.constant 0 : i32
    %c0_i32_0 = arith.constant 0 : i32
    return %arg0, %c0_i32 : i32, i32
  }
  func.func @transform_1(%arg0: i32) -> (i32, i32) {
    %c0_i32 = arith.constant 0 : i32
    %c0_i32_0 = arith.constant 0 : i32
    return %arg0, %c0_i32 : i32, i32
  }
  func.func @transform_2(%arg0: i32) -> (i32, i32) {
    %c0_i32 = arith.constant 0 : i32
    %c0_i32_0 = arith.constant 0 : i32
    return %arg0, %c0_i32 : i32, i32
  }
}

</mosaic_0001>

<llo_original>
// kernel: tpu_custom_call.1
$region0: #{tpu_custom_call.1}
  #allocation0 [shape = 'u32[]', space=smem, size = 0x4, offset = 0x4, fixed_abs, tag = 'smem constant byte address 0x4 - core index']
  #allocation1 [shape = 'u32[72,128]{1,0:T(1,128)}', space=vmem, size = 0x9000, scoped, tag = 'internal scratch']
  %s0 = inlined_call_operand.hbm [shape: f32[8,64], index: 0, kind: input, shape index: {}]
  %s1 = inlined_call_operand.hbm [shape: f32[64,64], index: 1, kind: input, shape index: {}]
  %s2 = inlined_call_operand.hbm [shape: f32[8,64], index: 2, kind: output, shape index: {}]
  %s3 = sld [smem:[#allocation0]]
  $region26: #{tpu_custom_call.1} parent=0
    _
  %s5 = ssub.s32 1, %s3
  %s6 = scalar_select 0, %s5, %s3
  $region1: #{tpu_custom_call.1} parent=0
    #allocation2 [shape = 'u8[4096]{0}', space=vmem, size = 0x1000, scoped, tag = 'input window, operand 0, single buffered']
    #allocation3 [shape = 's32[1]{0}', space=sflag, size = 0x4, scoped, tag = 'scoped memory for tpu_custom_call.1']
    #allocation4 [shape = 's32[1]{0}', space=sflag, size = 0x4, scoped, tag = 'scoped memory for tpu_custom_call.1']
    #allocation5 [shape = 'u8[4096]{0}', space=vmem, size = 0x1000, scoped, tag = 'input window, operand 1, single buffered']
    #allocation6 [shape = 's32[1]{0}', space=sflag, size = 0x4, scoped, tag = 'scoped memory for tpu_custom_call.1']
    #allocation7 [shape = 'u8[4096]{0}', space=vmem, size = 0x1000, scoped, tag = 'output window, operand 0, single buffered']
    %7 = vsyncpa [#allocation3], 0
    %8 = vsyncpa [#allocation6], 0
    %9 = vsyncpa [#allocation4], 0
    // Predicated region
    $region2: #{tpu_custom_call.1} parent=1 // pred_check
      _
    $region3: #{tpu_custom_call.1} parent=1 // pred_check_branch
      %11 = sbr.rel (0) target = $region5
    $region4: #{tpu_custom_call.1} parent=1 // pred_region
      %13 = vsyncadd [#allocation3], 0
      %s15 = sshll.u32 %s0, 4
      %s16 = int_to_ptr.hbm [resolvable:$true] %s15
      %s17 = sshll.u32 [#allocation2], 4
      %s18 = int_to_ptr.vmem [resolvable:$true] %s17
      %20 = dma.hbm_to_vmem [thread:$0]  %s16, 128, %s18, [#allocation3]
    $region5: #{tpu_custom_call.1} parent=1 // pred_fallthru
      _
    // Predicated region
    $region6: #{tpu_custom_call.1} parent=1 // pred_check
      _
    $region7: #{tpu_custom_call.1} parent=1 // pred_check_branch
      %22 = sbr.rel (0) target = $region9
    $region8: #{tpu_custom_call.1} parent=1 // pred_region
      %24 = vsyncadd [#allocation6], 0
      %s26 = sshll.u32 %s1, 4
      %s27 = int_to_ptr.hbm [resolvable:$true] %s26
      %s28 = sshll.u32 [#allocation5], 4
      %s29 = int_to_ptr.vmem [resolvable:$true] %s28
      %31 = dma.hbm_to_vmem [thread:$0]  %s27, 128, %s29, [#allocation6]
    $region9: #{tpu_custom_call.1} parent=1 // pred_fallthru
      _
    // Predicated region
    $region10: #{tpu_custom_call.1} parent=1 // pred_check
      _
    $region11: #{tpu_custom_call.1} parent=1 // pred_check_branch
      %33 = sbr.rel (0) target = $region13
    $region12: #{tpu_custom_call.1} parent=1 // pred_region
      %35 = dma.done [#allocation3], 128
    $region13: #{tpu_custom_call.1} parent=1 // pred_fallthru
      _
    // Predicated region
    $region14: #{tpu_custom_call.1} parent=1 // pred_check
      _
    $region15: #{tpu_custom_call.1} parent=1 // pred_check_branch
      %37 = sbr.rel (0) target = $region17
    $region16: #{tpu_custom_call.1} parent=1 // pred_region
      %39 = dma.done [#allocation6], 128
    $region17: #{tpu_custom_call.1} parent=1 // pred_fallthru
      _
    %v40 = vld [vmem:[#allocation2] sm:$0xff]
    %v41 = vld [vmem:[#allocation5] sm:$0xff]
    %v42 = vadd.f32 %v40, %v41
    %vm43 = vcmask 523264
    %44 = vst.msk [vmem:[#allocation7] sm:$0xff] %vm43, %v42
    // Predicated region
    $region18: #{tpu_custom_call.1} parent=1 // pred_check
      _
    $region19: #{tpu_custom_call.1} parent=1 // pred_check_branch
      %46 = sbr.rel (0) target = $region21
    $region20: #{tpu_custom_call.1} parent=1 // pred_region
      %48 = vsyncadd [#allocation4], 0
      %s50 = sshll.u32 [#allocation7], 4
      %s51 = int_to_ptr.vmem [resolvable:$true] %s50
      %s52 = sshll.u32 %s2, 4
      %s53 = int_to_ptr.hbm [resolvable:$true] %s52
      %55 = dma.vmem_to_hbm [thread:$0]  %s51, 128, %s53, [#allocation4]
    $region21: #{tpu_custom_call.1} parent=1 // pred_fallthru
      _
    // Predicated region
    $region22: #{tpu_custom_call.1} parent=1 // pred_check
      _
    $region23: #{tpu_custom_call.1} parent=1 // pred_check_branch
      %57 = sbr.rel (0) target = $region25
    $region24: #{tpu_custom_call.1} parent=1 // pred_region
      %59 = dma.done [#allocation4], 128
    $region25: #{tpu_custom_call.1} parent=1 // pred_fallthru
      _
    %60 = vsyncpa [#allocation3], 1
    %61 = vsyncpa [#allocation6], 1
    %62 = vsyncpa [#allocation4], 1

</llo_original>
